<compile_context>
chip_gen: v7x
topology: tpu7x:2x2x1
jax: 0.10.0
libtpu: 0.0.40
codegen_flags: <defaults>
</compile_context>

<pallas_src>
import functools
import math

import jax
import jax.numpy as jnp
from jax import lax
from jax.experimental import pallas as pl
from jax.experimental.pallas import tpu as pltpu


def _round_up(a, m):
    return (a + m - 1) // m * m


def _fcu_down_kernel(x_ref, w_ref, p_ref, o_ref, *, eps, c_out):
    # x_ref : (t_tile, C_in)   pooled patch features (bf16)
    # w_ref : (C_in, C_pad)    1x1 conv weight, channel-padded with zeros (bf16)
    # p_ref : (3, C_pad)       rows: [conv bias, ln gamma, ln beta]  (f32)
    # o_ref : (t_tile, C_pad)  bf16 output; padded columns sliced off by caller
    x = x_ref[...]
    w = w_ref[...]
    p = p_ref[...]
    b, g, beta = p[0:1, :], p[1:2, :], p[2:3, :]

    # fused 1x1 conv (bf16 operands, f32 accumulation on the MXU) + bias.
    # Padded channel columns have zero weight and zero bias -> y == 0 there.
    y = jnp.dot(x, w, preferred_element_type=jnp.float32) + b   # (t_tile, C_pad)

    # Single-pass LayerNorm statistics over the *true* channel count (eps=1e-6).
    inv_c = jnp.float32(1.0 / c_out)
    mu = jnp.sum(y, axis=-1, keepdims=True) * inv_c
    ms = jnp.sum(y * y, axis=-1, keepdims=True) * inv_c
    var = ms - mu * mu
    scale = g * lax.rsqrt(var + eps)      # gamma folded into the rsqrt factor
    yn = (y - mu) * scale + beta

    # exact (erf-based) GELU, matching torch.nn.GELU default
    inv_sqrt2 = jnp.float32(0.7071067811865476)
    o_ref[...] = (0.5 * yn * (1.0 + lax.erf(yn * inv_sqrt2))).astype(o_ref.dtype)


def fcu_down(x, x_t, w_conv, b_conv, ln_gamma, ln_beta, *, dw_stride,
             eps=1e-6, t_tile=1024, compute_dtype=jnp.bfloat16,
             out_dtype=jnp.bfloat16):
    """x: (B, C_in, H, W) NCHW; x_t: (B, L, C_out). Returns (B, 1+N, C_out).

    w_conv is the 1x1 conv weight as a (C_in, C_out) matmul matrix
    (i.e. torch_weight[:, :, 0, 0].T); b_conv/ln_gamma/ln_beta are (C_out,).
    """
    B, C_in, H, W = x.shape
    s = dw_stride
    assert H % s == 0 and W % s == 0
    Hs, Ws = H // s, W // s
    N = Hs * Ws
    C_out = w_conv.shape[-1]
    tokens = B * N

    # ---- glue: average-pool first (commutes with the 1x1 conv), then lay the
    # pooled (s^2-times smaller) tensor out channels-minor for the matmul.
    x_pool = x.reshape(B, C_in, Hs, s, Ws, s).mean(axis=(3, 5))   # (B,C_in,Hs,Ws) f32
    x_tok = (x_pool.transpose(0, 2, 3, 1)                         # (B,Hs,Ws,C_in)
                   .reshape(tokens, C_in)
                   .astype(compute_dtype))

    # ---- pad the channel dim to a lane-dense multiple of 128 ----
    C_pad = _round_up(C_out, 128)
    w_m = jnp.asarray(w_conv, jnp.float32)
    if C_pad != C_out:
        w_m = jnp.pad(w_m, ((0, 0), (0, C_pad - C_out)))
    w_m = w_m.astype(compute_dtype)

    # pack bias / gamma / beta into a single (3, C_pad) f32 operand (zero-padded)
    params = jnp.zeros((3, C_pad), jnp.float32)
    params = params.at[0, :C_out].set(jnp.reshape(b_conv, (C_out,)).astype(jnp.float32))
    params = params.at[1, :C_out].set(jnp.reshape(ln_gamma, (C_out,)).astype(jnp.float32))
    params = params.at[2, :C_out].set(jnp.reshape(ln_beta, (C_out,)).astype(jnp.float32))

    # ---- tile sizing: sublane-aligned, >= 2 grid steps when possible (v7x
    # megacore), NO token padding (partial tail block is masked by Pallas) ----
    t_tile = min(int(t_tile), _round_up(pl.cdiv(tokens, 2), 8))
    t_tile = max(8, _round_up(t_tile, 8))
    grid = (pl.cdiv(tokens, t_tile),)

    # ---- VMEM budget from the double-buffered working set (+ headroom) ----
    cbytes = jnp.dtype(compute_dtype).itemsize
    obytes = jnp.dtype(out_dtype).itemsize
    work = (2 * t_tile * C_in * cbytes        # input tiles (double-buffered)
            + 2 * C_in * C_pad * cbytes       # weight
            + 2 * 3 * C_pad * 4               # packed scalars
            + 2 * t_tile * C_pad * obytes     # output tiles
            + 6 * t_tile * C_pad * 4)         # f32 intermediates / scratch
    vmem_limit = min(max(int(1.2 * work) + (2 << 20), 32 << 20), 56 << 20)

    kernel = functools.partial(_fcu_down_kernel, eps=float(eps), c_out=C_out)

    y = pl.pallas_call(
        kernel,
        out_shape=jax.ShapeDtypeStruct((tokens, C_pad), out_dtype),
        grid_spec=pltpu.PrefetchScalarGridSpec(
            num_scalar_prefetch=0,
            grid=grid,
            in_specs=[
                pl.BlockSpec((t_tile, C_in), lambda i: (i, 0)),
                pl.BlockSpec((C_in, C_pad), lambda i: (0, 0)),
                pl.BlockSpec((3, C_pad), lambda i: (0, 0)),
            ],
            out_specs=pl.BlockSpec((t_tile, C_pad), lambda i: (i, 0)),
        ),
        compiler_params=pltpu.CompilerParams(
            dimension_semantics=("parallel",),
            vmem_limit_bytes=vmem_limit,
            allow_input_fusion=[True, False, False],
        ),
    )(x_tok, w_m, params)

    y = y[:, :C_out].reshape(B, N, C_out)
    # ---- glue: prepend cls token from x_t ----
    cls = x_t[:, 0][:, None, :].astype(y.dtype)
    return jnp.concatenate([cls, y], axis=1)


def _fcu_down_ref(x, x_t, w_conv, b_conv, ln_gamma, ln_beta, *, dw_stride,
                  eps=1e-6):
    """Pure-JAX f32 reference of the PyTorch module (for correctness check)."""
    B, C_in, H, W = x.shape
    s = dw_stride
    Hs, Ws = H // s, W // s
    C_out = w_conv.shape[-1]
    y = jnp.einsum('bchw,cd->bdhw', x, w_conv) + b_conv.reshape(1, C_out, 1, 1)
    y = y.reshape(B, C_out, Hs, s, Ws, s).mean(axis=(3, 5))        # avg pool
    y = y.reshape(B, C_out, Hs * Ws).transpose(0, 2, 1)            # (B, N, C_out)
    mu = y.mean(-1, keepdims=True)
    var = ((y - mu) ** 2).mean(-1, keepdims=True)
    yn = (y - mu) / jnp.sqrt(var + eps)
    yn = yn * ln_gamma.reshape(1, 1, C_out) + ln_beta.reshape(1, 1, C_out)
    yn = 0.5 * yn * (1.0 + lax.erf(yn / jnp.sqrt(2.0)))
    return jnp.concatenate([x_t[:, 0:1, :], yn], axis=1)


if __name__ == "__main__":
    # small shapes consistent with the module
    B, C_in, H, W = 2, 4, 16, 16
    dw_stride = 4
    C_out = 32
    N = (H // dw_stride) * (W // dw_stride)      # 16
    L = 1 + N                                    # transformer seq length

    key = jax.random.PRNGKey(0)
    k1, k2, k3, k4 = jax.random.split(key, 4)

    x = jax.random.normal(k1, (B, C_in, H, W), dtype=jnp.float32)
    x_t = jax.random.normal(k2, (B, L, C_out), dtype=jnp.float32)

    # conv_project: nn.Conv2d(C_in, C_out, 1) -> stored as (C_in, C_out) matmul
    # weight + (C_out,) bias
    fan_in = C_in  # kernel_size = 1
    bound = 1.0 / math.sqrt(fan_in)
    w_conv = jax.random.uniform(k3, (C_in, C_out), jnp.float32, -bound, bound)
    b_conv = jax.random.uniform(k4, (C_out,), jnp.float32, -bound, bound)

    # LayerNorm params (default init: gamma=1, beta=0)
    ln_gamma = jnp.ones((C_out,), jnp.float32)
    ln_beta = jnp.zeros((C_out,), jnp.float32)

    out = fcu_down(x, x_t, w_conv, b_conv, ln_gamma, ln_beta,
                   dw_stride=dw_stride)
    out = jax.block_until_ready(out)
    assert out.shape == (B, 1 + N, C_out), out.shape

    ref = _fcu_down_ref(x, x_t, w_conv, b_conv, ln_gamma, ln_beta,
                        dw_stride=dw_stride)
    ref = jax.block_until_ready(ref)
    # bf16 matmul operands + bf16 output => loosened tolerance vs the f32 ref
    err = float(jnp.max(jnp.abs(out.astype(jnp.float32) - ref)))
    assert err < 5e-2, err
    print("KERNEL_OK")
</pallas_src>

<mosaic_0001>
module attributes {stable_mosaic.version = 11 : i64} {
  func.func @_fcu_down_kernel(%arg0: i32, %arg1: memref<16x4xbf16, #tpu.memory_space<vmem>>, %arg2: memref<4x128xbf16, #tpu.memory_space<vmem>>, %arg3: memref<3x128xf32, #tpu.memory_space<vmem>>, %arg4: memref<16x128xbf16, #tpu.memory_space<vmem>>) attributes {dimension_semantics = [#tpu.dimension_semantics<parallel>], iteration_bounds = array<i64: 2>, scalar_prefetch = 0 : i64, scratch_operands = 0 : i64, tpu.core_type = #tpu.core_type<tc>, window_params = [{transform_indices = @transform_0, window_bounds = array<i64: 16, 4>}, {pipeline_mode = #tpu.pipeline_mode<synchronous>, transform_indices = @transform_1, window_bounds = array<i64: 4, 128>}, {pipeline_mode = #tpu.pipeline_mode<synchronous>, transform_indices = @transform_2, window_bounds = array<i64: 3, 128>}, {transform_indices = @transform_3, window_bounds = array<i64: 16, 128>}]} {
    %c0 = arith.constant 0 : index
    %c0_0 = arith.constant 0 : index
    %0 = vector.load %arg1[%c0, %c0_0] : memref<16x4xbf16, #tpu.memory_space<vmem>>, vector<16x4xbf16>
    %c0_1 = arith.constant 0 : index
    %c0_2 = arith.constant 0 : index
    %1 = vector.load %arg2[%c0_1, %c0_2] : memref<4x128xbf16, #tpu.memory_space<vmem>>, vector<4x128xbf16>
    %c0_3 = arith.constant 0 : index
    %c0_4 = arith.constant 0 : index
    %2 = vector.load %arg3[%c0_3, %c0_4] : memref<3x128xf32, #tpu.memory_space<vmem>>, vector<3x128xf32>
    %3 = vector.extract_strided_slice %2 {offsets = [0, 0], sizes = [1, 128], strides = [1, 1]} : vector<3x128xf32> to vector<1x128xf32>
    %4 = vector.extract_strided_slice %2 {offsets = [1, 0], sizes = [1, 128], strides = [1, 1]} : vector<3x128xf32> to vector<1x128xf32>
    %5 = vector.extract_strided_slice %2 {offsets = [2, 0], sizes = [1, 128], strides = [1, 1]} : vector<3x128xf32> to vector<1x128xf32>
    %cst = arith.constant dense<0.000000e+00> : vector<16x128xf32>
    %6 = tpu.matmul %0, %1, %cst {dimension_numbers = #tpu.dot_dimension_numbers<[1], [0], [0], [1], [0, 0, 1, 1], [], []>} : vector<16x4xbf16>, vector<4x128xbf16>, vector<16x128xf32> -> vector<16x128xf32>
    %7 = vector.broadcast %3 : vector<1x128xf32> to vector<16x128xf32>
    %8 = arith.addf %6, %7 : vector<16x128xf32>
    %cst_5 = arith.constant dense<0.000000e+00> : vector<16xf32>
    %9 = vector.multi_reduction <add>, %8, %cst_5 [1] : vector<16x128xf32> to vector<16xf32>
    %10 = vector.shape_cast %9 : vector<16xf32> to vector<16x1xf32>
    %cst_6 = arith.constant 3.125000e-02 : f32
    %11 = vector.broadcast %cst_6 : f32 to vector<16x1xf32>
    %12 = arith.mulf %10, %11 : vector<16x1xf32>
    %13 = arith.mulf %8, %8 : vector<16x128xf32>
    %cst_7 = arith.constant dense<0.000000e+00> : vector<16xf32>
    %14 = vector.multi_reduction <add>, %13, %cst_7 [1] : vector<16x128xf32> to vector<16xf32>
    %15 = vector.shape_cast %14 : vector<16xf32> to vector<16x1xf32>
    %cst_8 = arith.constant 3.125000e-02 : f32
    %16 = vector.broadcast %cst_8 : f32 to vector<16x1xf32>
    %17 = arith.mulf %15, %16 : vector<16x1xf32>
    %18 = arith.mulf %12, %12 : vector<16x1xf32>
    %19 = arith.subf %17, %18 : vector<16x1xf32>
    %cst_9 = arith.constant 9.99999997E-7 : f32
    %20 = vector.broadcast %cst_9 : f32 to vector<16x1xf32>
    %21 = arith.addf %19, %20 : vector<16x1xf32>
    %22 = math.rsqrt %21 : vector<16x1xf32>
    %23 = vector.broadcast %4 : vector<1x128xf32> to vector<16x128xf32>
    %24 = vector.broadcast %22 : vector<16x1xf32> to vector<16x128xf32>
    %25 = arith.mulf %23, %24 : vector<16x128xf32>
    %26 = vector.broadcast %12 : vector<16x1xf32> to vector<16x128xf32>
    %27 = arith.subf %8, %26 : vector<16x128xf32>
    %28 = arith.mulf %27, %25 : vector<16x128xf32>
    %29 = vector.broadcast %5 : vector<1x128xf32> to vector<16x128xf32>
    %30 = arith.addf %28, %29 : vector<16x128xf32>
    %cst_10 = arith.constant 5.000000e-01 : f32
    %31 = vector.broadcast %cst_10 : f32 to vector<16x128xf32>
    %32 = arith.mulf %31, %30 : vector<16x128xf32>
    %cst_11 = arith.constant 0.707106769 : f32
    %33 = vector.broadcast %cst_11 : f32 to vector<16x128xf32>
    %34 = arith.mulf %30, %33 : vector<16x128xf32>
    %35 = math.erf %34 : vector<16x128xf32>
    %cst_12 = arith.constant 1.000000e+00 : f32
    %36 = vector.broadcast %cst_12 : f32 to vector<16x128xf32>
    %37 = arith.addf %36, %35 : vector<16x128xf32>
    %38 = arith.mulf %32, %37 : vector<16x128xf32>
    %39 = arith.truncf %38 : vector<16x128xf32> to vector<16x128xbf16>
    %c0_13 = arith.constant 0 : index
    %c0_14 = arith.constant 0 : index
    %40 = vector.load %arg4[%c0_13, %c0_14] : memref<16x128xbf16, #tpu.memory_space<vmem>>, vector<16x128xbf16>
    tpu.vector_store %arg4[%c0_13, %c0_14], %39 {strides = array<i32>} : memref<16x128xbf16, #tpu.memory_space<vmem>>, vector<16x128xbf16>,
    return
  }
  func.func @transform_0(%arg0: i32) -> (i32, i32) {
    %c0_i32 = arith.constant 0 : i32
    %c0_i32_0 = arith.constant 0 : i32
    return %arg0, %c0_i32 : i32, i32
  }
  func.func @transform_1(%arg0: i32) -> (i32, i32) {
    %c0_i32 = arith.constant 0 : i32
    %c0_i32_0 = arith.constant 0 : i32
    %c0_i32_1 = arith.constant 0 : i32
    return %c0_i32, %c0_i32_0 : i32, i32
  }
  func.func @transform_2(%arg0: i32) -> (i32, i32) {
    %c0_i32 = arith.constant 0 : i32
    %c0_i32_0 = arith.constant 0 : i32
    %c0_i32_1 = arith.constant 0 : i32
    return %c0_i32, %c0_i32_0 : i32, i32
  }
  func.func @transform_3(%arg0: i32) -> (i32, i32) {
    %c0_i32 = arith.constant 0 : i32
    %c0_i32_0 = arith.constant 0 : i32
    return %arg0, %c0_i32 : i32, i32
  }
}

</mosaic_0001>

<llo_original>
// kernel: tpu_custom_call.1
$region0: #{tpu_custom_call.1}
  #allocation0 [shape = 'u32[]', space=smem, size = 0x4, offset = 0x4, fixed_abs, tag = 'smem constant byte address 0x4 - core index']
  #allocation1 [shape = 'u32[144,128]{1,0:T(1,128)}', space=vmem, size = 0x12000, scoped, tag = 'internal scratch']
  %s0 = inlined_call_operand.vmem [shape: bf16[32,4], index: 0, kind: input, shape index: {}]
  %s1 = inlined_call_operand.vmem [shape: bf16[4,128], index: 1, kind: input, shape index: {}]
  %s2 = inlined_call_operand.vmem [shape: f32[3,128], index: 2, kind: input, shape index: {}]
  %s3 = inlined_call_operand.hbm [shape: bf16[32,128], index: 3, kind: output, shape index: {}]
  %s4 = sld [smem:[#allocation0]]
  $region45: #{tpu_custom_call.1} parent=0
    _
  %s6 = ssub.s32 1, %s4
  %s7 = scalar_select 0, %s6, %s4
  $region1: #{tpu_custom_call.1} parent=0
    #allocation2 [shape = 'u8[8192]{0}', space=vmem, size = 0x2000, scoped, tag = 'output window, operand 0']
    #allocation3 [shape = 's32[2]{0}', space=sflag, size = 0x8, scoped, tag = 'scoped memory for tpu_custom_call.1']
    %8 = vsyncpa [#allocation3], 0
    %s9 = scalar_lea.sflag [#allocation3], 1
    %10 = vsyncpa %s9, 0
    loop: start=0, step=1, limit=4
    $region2: #{tpu_custom_call.1} parent=1 // loop_pre_header
      _
    $region3: #{tpu_custom_call.1} parent=1 // loop_header
      %s12 = sphi 0, %s16
      %p13 = scmp.ge.s32.totalorder %s12, 4
      %s22 = sphi 0, %s24
      %s25 = sphi 0, %s22
      %s26 = sphi 0, %s25
      %s42 = sphi 0, %s26
      %s46 = sphi 0, %s46
      %s48 = sphi 0, %s46
      %s49 = sphi 0, %s48
      %s63 = sphi 0, %s49
      %s67 = sphi 0, %s67
      %s69 = sphi 0, %s67
      %s70 = sphi 0, %s69
      %s84 = sphi 0, %s70
      %s90 = sphi 0, %s92
      %s93 = sphi 0, %s90
      %s94 = sphi 0, %s93
      %s110 = sphi 0, %s94
    $region4: #{tpu_custom_call.1} parent=1 // loop_header_branch
      %15 = sbr.rel (%p13) target = $region8
    $region5: #{tpu_custom_call.1} parent=1 // loop_body
      %s17 = ssub.s32 %s12, 1
      %s18 = ssub.s32 %s12, 2
      %s19 = sadd.s32 %s12, 1
      %s20 = ssub.s32 %s12, %s19
      %p21 = scmp.eq.s32.totalorder %s20, 0
      %s23 = sadd.s32 %s22, 1
      %s24 = scalar_select %p21, %s22, %s23
      %p27 = pneg %p21
      %p28 = scmp.eq.s32.totalorder %s12, 1
      %p29 = por %p27, %p28
      %p30 = scmp.ne.s32.totalorder %s22, %s25
      %p31 = scmp.eq.s32.totalorder %s12, 0
      %p32 = por %p30, %p31
      %p33 = scmp.ne.s32.totalorder %s22, %s25
      %p34 = scmp.eq.s32.totalorder %s17, 1
      %p35 = por %p33, %p34
      %p36 = scmp.ne.s32.totalorder %s25, %s26
      %p37 = scmp.eq.s32.totalorder %s17, 0
      %p38 = por %p36, %p37
      %p39 = scmp.ne.s32.totalorder %s25, %s26
      %p40 = scmp.eq.s32.totalorder %s18, 1
      %p41 = por %p39, %p40
      %p43 = scmp.ne.s32.totalorder %s26, %s42
      %p44 = scmp.eq.s32.totalorder %s18, 0
      %p45 = por %p43, %p44
      %s47 = sadd.s32 %s46, 1
      %p50 = scmp.eq.s32.totalorder %s12, 1
      %p51 = scmp.ne.s32.totalorder %s46, %s48
      %p52 = scmp.eq.s32.totalorder %s12, 0
      %p53 = por %p51, %p52
      %p54 = scmp.ne.s32.totalorder %s46, %s48
      %p55 = scmp.eq.s32.totalorder %s17, 1
      %p56 = por %p54, %p55
      %p57 = scmp.ne.s32.totalorder %s48, %s49
      %p58 = scmp.eq.s32.totalorder %s17, 0
      %p59 = por %p57, %p58
      %p60 = scmp.ne.s32.totalorder %s48, %s49
      %p61 = scmp.eq.s32.totalorder %s18, 1
      %p62 = por %p60, %p61
      %p64 = scmp.ne.s32.totalorder %s49, %s63
      %p65 = scmp.eq.s32.totalorder %s18, 0
      %p66 = por %p64, %p65
      %s68 = sadd.s32 %s67, 1
      %p71 = scmp.eq.s32.totalorder %s12, 1
      %p72 = scmp.ne.s32.totalorder %s67, %s69
      %p73 = scmp.eq.s32.totalorder %s12, 0
      %p74 = por %p72, %p73
      %p75 = scmp.ne.s32.totalorder %s67, %s69
      %p76 = scmp.eq.s32.totalorder %s17, 1
      %p77 = por %p75, %p76
      %p78 = scmp.ne.s32.totalorder %s69, %s70
      %p79 = scmp.eq.s32.totalorder %s17, 0
      %p80 = por %p78, %p79
      %p81 = scmp.ne.s32.totalorder %s69, %s70
      %p82 = scmp.eq.s32.totalorder %s18, 1
      %p83 = por %p81, %p82
      %p85 = scmp.ne.s32.totalorder %s70, %s84
      %p86 = scmp.eq.s32.totalorder %s18, 0
      %p87 = por %p85, %p86
      %s88 = ssub.s32 %s12, %s19
      %p89 = scmp.eq.s32.totalorder %s88, 0
      %s91 = sadd.s32 %s90, 1
      %s92 = scalar_select %p89, %s90, %s91
      %p95 = pneg %p89
      %p96 = scmp.eq.s32.totalorder %s12, 1
      %p97 = por %p95, %p96
      %p98 = scmp.ne.s32.totalorder %s90, %s93
      %p99 = scmp.eq.s32.totalorder %s12, 0
      %p100 = por %p98, %p99
      %p101 = scmp.ne.s32.totalorder %s90, %s93
      %p102 = scmp.eq.s32.totalorder %s17, 1
      %p103 = por %p101, %p102
      %p104 = scmp.ne.s32.totalorder %s93, %s94
      %p105 = scmp.eq.s32.totalorder %s17, 0
      %p106 = por %p104, %p105
      %p107 = scmp.ne.s32.totalorder %s93, %s94
      %p108 = scmp.eq.s32.totalorder %s18, 1
      %p109 = por %p107, %p108
      %p111 = scmp.ne.s32.totalorder %s94, %s110
      %p112 = scmp.eq.s32.totalorder %s18, 0
      %p113 = por %p111, %p112
      %p114 = scmp.le.s32.totalorder 1, %s12
      %p115 = scmp.lt.s32.totalorder %s12, 3
      %p116 = pnand %p114, %p115
      %p117 = pneg %p116
      // Predicated region
      $region9: #{tpu_custom_call.1} parent=5 // pred_check
        _
      $region10: #{tpu_custom_call.1} parent=5 // pred_check_branch
        %119 = sbr.rel (%p116) target = $region12
      $region11: #{tpu_custom_call.1} parent=5 // pred_region
        %s120 = ssub.s32 %s12, 1
        // Predicated region
        $region13: #{tpu_custom_call.1} parent=11 // pred_check
          %p121 = pneg %p59
        $region14: #{tpu_custom_call.1} parent=11 // pred_check_branch
          %123 = sbr.rel (%p121) target = $region16
        $region15: #{tpu_custom_call.1} parent=11 // pred_region
          _
        $region16: #{tpu_custom_call.1} parent=11 // pred_fallthru
          _
        // Predicated region
        $region17: #{tpu_custom_call.1} parent=11 // pred_check
          %p124 = pneg %p80
        $region18: #{tpu_custom_call.1} parent=11 // pred_check_branch
          %126 = sbr.rel (%p124) target = $region20
        $region19: #{tpu_custom_call.1} parent=11 // pred_region
          _
        $region20: #{tpu_custom_call.1} parent=11 // pred_fallthru
          _
      $region12: #{tpu_custom_call.1} parent=5 // pred_fallthru
        _
      %p127 = scmp.lt.s32.totalorder %s12, 2
      // Predicated region
      $region21: #{tpu_custom_call.1} parent=5 // pred_check
        %p128 = pneg %p127
      $region22: #{tpu_custom_call.1} parent=5 // pred_check_branch
        %130 = sbr.rel (%p128) target = $region24
      $region23: #{tpu_custom_call.1} parent=5 // pred_region
        // Predicated region
        $region25: #{tpu_custom_call.1} parent=23 // pred_check
          %p131 = pneg %p32
        $region26: #{tpu_custom_call.1} parent=23 // pred_check_branch
          %133 = sbr.rel (%p131) target = $region28
        $region27: #{tpu_custom_call.1} parent=23 // pred_region
          %s134 = smul.u32 2, %s12
          %p135 = scmp.lt.s32.totalorder %s134, 3
          %s136 = scalar_select %p135, %s134, 3
          %s137 = smul.addr %s136, 4
          %s138 = scalar_lea.vmem %s0, %s137
          %s139 = smul.u32 2, %s12
        $region28: #{tpu_custom_call.1} parent=23 // pred_fallthru
          _
      $region24: #{tpu_custom_call.1} parent=5 // pred_fallthru
        _
      %p140 = scmp.le.s32.totalorder 1, %s12
      %p141 = scmp.lt.s32.totalorder %s12, 3
      %p142 = pnand %p140, %p141
      %p143 = pneg %p142
      // Predicated region
      $region29: #{tpu_custom_call.1} parent=5 // pred_check
        _
      $region30: #{tpu_custom_call.1} parent=5 // pred_check_branch
        %145 = sbr.rel (%p142) target = $region32
      $region31: #{tpu_custom_call.1} parent=5 // pred_region
        %s146 = ssub.s32 %s12, 1
        %s147 = smul.u32 2, %s17
        %p148 = scmp.lt.s32.totalorder %s147, 3
        %s149 = scalar_select %p148, %s147, 3
        %s150 = smul.addr %s149, 4
        %s151 = scalar_lea.vmem %s0, %s150
        %p152 = pneg %p38
        %p153 = pneg %p35
        %p154 = pneg %p59
        %p155 = pneg %p56
        %p156 = pneg %p80
        %p157 = pneg %p77
        %p158 = pneg %p106
        %p159 = pneg %p103
        %s160 = sand.u32 %s93, 1
        %s161 = scalar_lea.sflag [#allocation3], %s160
        %s162 = sand.u32 %s93, 1
        %s163 = smul.addr %s162, 8
        %s164 = scalar_lea.vmem [#allocation2], %s163
        %s165 = smul.u32 2, %s17
        %p166 = scmp.lt.s32.totalorder %s165, 3
        %s167 = scalar_select %p166, %s165, 3
        %s168 = smul.addr %s167, 4
        %s169 = scalar_lea.vmem %s0, %s168
        %s170 = smul.u32 2, %s17
        %s171 = smul.u32 2, %s17
        %v173 = vld [vmem:[%s169] sm:$0xf]
        %v174 = vld [vmem:[%s169 + $0x4] sm:$0xf]
        %v175 = vld [vmem:[%s1] sm:$0x3]
        %v176 = vld [vmem:[%s2] sm:$0x7]
        %v177 = vlaneseq
        %v178 = vshrl.u32 %v177, 7
        %v179 = vsub.s32 0, %v178
        %v180 = vrot.slane %v176, %v179
        %v183 = vunpack.c.l.b16 %v173
        %v184 = vunpack.c.l.b16 %v174
        %v185 = vpack.c.b16 %v184, %v183
        %vm186 = vcmask 31744
        %v188 = vsel %vm186, %v185, 0
        %vm190 = vcmask 1041408
        %v192 = vsel %vm190, %v175, 0
        %194 = vmatprep.subr.bf16.mxu0 0
        %195 = vmatpush1.bf16.msra.mxu0 %v192
        %196 = vmatprep.subr.bf16.mxu0 0
        %197 = vmatpush1.bf16.msra.mxu0 0
        %198 = vmatprep.subr.bf16.mxu0 0
        %199 = vmatpush1.bf16.msra.mxu0 0
        %200 = vmatprep.subr.bf16.mxu0 0
        %201 = vmatpush1.bf16.msra.mxu0 0
        %202 = vmatprep.subr.bf16.mxu0 0
        %203 = vmatpush1.bf16.msra.mxu0 0
        %204 = vmatprep.subr.bf16.mxu0 0
        %205 = vmatpush1.bf16.msra.mxu0 0
        %206 = vmatprep.subr.bf16.mxu0 0
        %207 = vmatpush1.bf16.msra.mxu0 0
        %208 = vmatprep.subr.bf16.mxu0 0
        %209 = vmatpush1.bf16.msra.mxu0 0
        %210 = vmatprep.subr.bf16.mxu0 0
        %211 = vmatpush1.bf16.msra.mxu0 0
        %212 = vmatprep.subr.bf16.mxu0 0
        %213 = vmatpush1.bf16.msra.mxu0 0
        %214 = vmatprep.subr.bf16.mxu0 0
        %215 = vmatpush1.bf16.msra.mxu0 0
        %216 = vmatprep.subr.bf16.mxu0 0
        %217 = vmatpush1.bf16.msra.mxu0 0
        %218 = vmatprep.subr.bf16.mxu0 0
        %219 = vmatpush1.bf16.msra.mxu0 0
        %220 = vmatprep.subr.bf16.mxu0 0
        %221 = vmatpush1.bf16.msra.mxu0 0
        %222 = vmatprep.subr.bf16.mxu0 0
        %223 = vmatpush1.bf16.msra.mxu0 0
        %224 = vmatprep.subr.bf16.mxu0 0
        %225 = vmatpush1.bf16.msra.mxu0 0
        %226 = vmatprep.mubr.bf16.mxu0 0
        %227 = vmatmul.mubr.bf16.gmra.mrb[0].mxu0 %v188
        %v228 = vpop.f32.mrb[0].mxu0
        %v229 = vadd.f32 %v180, %v228
        %v230 = vpop.f32.mrb[0].mxu0
        %v231 = vpop.f32.mrb[0].mxu0
        %v232 = vadd.f32 %v180, %v231
        %v233 = vpop.f32.mrb[0].mxu0
        %234 = vdwg.mxu0
        %235 = vadd.xlane.f32.xlu0 %v229
        %v236 = vpop.xlane.xlu0 %235
        %237 = vadd.xlane.f32.xlu0 %v232
        %v238 = vpop.xlane.xlu0 %237
        %v239 = vmul.f32 %v236, 0.03125
        %v240 = vmul.f32 %v238, 0.03125
        %v241 = vmul.f32 %v229, %v229
        %v242 = vmul.f32 %v232, %v232
        %243 = vadd.xlane.f32.xlu0 %v241
        %v244 = vpop.xlane.xlu0 %243
        %245 = vadd.xlane.f32.xlu0 %v242
        %v246 = vpop.xlane.xlu0 %245
        %v247 = vmul.f32 %v244, 0.03125
        %v248 = vmul.f32 %v246, 0.03125
        %v249 = vmul.f32 %v239, %v239
        %v250 = vmul.f32 %v240, %v240
        %v251 = vsub.f32 %v247, %v249
        %v252 = vsub.f32 %v248, %v250
        %v253 = vadd.f32 %v251, 1e-06
        %v254 = vadd.f32 %v252, 1e-06
        %v255 = vrsqrt.pop %v253
        %v256 = vrsqrt.pop %v254
        %v257 = vlaneseq
        %v258 = vshrl.u32 %v257, 7
        %v259 = vsub.s32 1, %v258
        %v260 = vrot.slane %v176, %v259
        %v261 = vmul.f32 %v260, %v255
        %v262 = vmul.f32 %v260, %v256
        %v263 = vsub.f32 %v229, %v239
        %v264 = vsub.f32 %v232, %v240
        %v265 = vmul.f32 %v263, %v261
        %v266 = vmul.f32 %v264, %v262
        %v267 = vlaneseq
        %v268 = vshrl.u32 %v267, 7
        %v269 = vsub.s32 2, %v268
        %v270 = vrot.slane %v176, %v269
        %v271 = vadd.f32 %v265, %v270
        %v272 = vadd.f32 %v266, %v270
        %v273 = vmul.f32 %v271, 0.5
        %v274 = vmul.f32 %v272, 0.5
        %v275 = vmul.f32 %v271, 0.70710677
        %v276 = vmul.f32 %v272, 0.70710677
        %v277 = verf.f32.pop %v275
        %v278 = verf.f32.pop %v276
        %v279 = vadd.f32 %v277, 1.0
        %v280 = vadd.f32 %v278, 1.0
        %v281 = vmul.f32 %v273, %v279
        %v282 = vmul.f32 %v274, %v280
        %v283 = vpack.c.bf16 %v282, %v281
        %v285 = vunpack.c.l.b16 %v283
        %v286 = vunpack.c.h.b16 %v283
        %v287 = vpack.c.b16 %v285, %v285
        %v288 = vpack.c.b16 %v286, %v286
        %291 = vst [vmem:[%s164] sm:$0xf] %v287
        %292 = vst [vmem:[%s164 + $0x4] sm:$0xf] %v288
        %s293 = sand.u32 %s93, 1
        %s294 = scalar_lea.sflag [#allocation3], %s293
        %s295 = sand.u32 %s93, 1
        %s296 = smul.addr %s295, 8
        %s297 = scalar_lea.vmem [#allocation2], %s296
        // Predicated region
        $region33: #{tpu_custom_call.1} parent=31 // pred_check
          %p298 = pneg %p103
        $region34: #{tpu_custom_call.1} parent=31 // pred_check_branch
          %300 = sbr.rel (%p298) target = $region36
        $region35: #{tpu_custom_call.1} parent=31 // pred_region
          %s301 = smul.u32 2, %s17
          %s303 = ssub.s32 128, 128
          %304 = vsyncadd %s294, %s303
          %s305 = smul.addr %s301, 64
          %s306 = scalar_lea.hbm %s3, %s305
          %s307 = sshll.u32 %s297, 4
          %s308 = int_to_ptr.vmem [resolvable:$true] %s307
          %313 = dma.vmem_to_hbm [thread:$0]  %s308, 128, %s306, %s294, 64, 64, 4
        $region36: #{tpu_custom_call.1} parent=31 // pred_fallthru
          _
      $region32: #{tpu_custom_call.1} parent=5 // pred_fallthru
        _
      %p314 = scmp.le.s32.totalorder 2, %s12
      // Predicated region
      $region37: #{tpu_custom_call.1} parent=5 // pred_check
        %p315 = pneg %p314
      $region38: #{tpu_custom_call.1} parent=5 // pred_check_branch
        %317 = sbr.rel (%p315) target = $region40
      $region39: #{tpu_custom_call.1} parent=5 // pred_region
        %s318 = ssub.s32 %s12, 2
        // Predicated region
        $region41: #{tpu_custom_call.1} parent=39 // pred_check
          %p319 = pneg %p109
        $region42: #{tpu_custom_call.1} parent=39 // pred_check_branch
          %321 = sbr.rel (%p319) target = $region44
        $region43: #{tpu_custom_call.1} parent=39 // pred_region
          %s322 = sand.u32 %s94, 1
          %s323 = scalar_lea.sflag [#allocation3], %s322
          %s324 = sand.u32 %s94, 1
          %s325 = smul.addr %s324, 8
          %s326 = scalar_lea.vmem [#allocation2], %s325
          %327 = dma.done %s323, 128
        $region44: #{tpu_custom_call.1} parent=39 // pred_fallthru
          _
      $region40: #{tpu_custom_call.1} parent=5 // pred_fallthru
        _
    $region6: #{tpu_custom_call.1} parent=1 // loop_footer
      %s16 = sadd.s32 1, %s12
    $region7: #{tpu_custom_call.1} parent=1 // loop_footer_branch
      %11 = sbr.rel target = $region3
    $region8: #{tpu_custom_call.1} parent=1 // loop_exit
      _
    %328 = vsyncpa [#allocation3], 1
    %s329 = scalar_lea.sflag [#allocation3], 1
    %330 = vsyncpa %s329, 1

</llo_original>
